<compile_context>
chip_gen: v7x
topology: tpu7x:2x2x1
jax: 0.10.0
libtpu: 0.0.40
codegen_flags: <defaults>
</compile_context>

<pallas_src>
import functools

import jax
import jax.numpy as jnp
from jax.experimental import pallas as pl
from jax.experimental.pallas import tpu as pltpu

_NEG_INF = -1e30   # large-negative mask value (no inf-inf NaNs, bf16-representable)


# ----------------------------------------------------------------------------
# Generation-aware helpers
# ----------------------------------------------------------------------------
def _vmem_limit_bytes():
    """Scoped-VMEM budget: ~3/4 of physical VMEM (v5e/v6e: 128 MiB, v7x: 64 MiB)."""
    try:
        cap = int(pltpu.get_tpu_info().vmem_capacity_bytes)
    except Exception:
        cap = 64 * 1024 * 1024
    limit = (cap * 3) // 4
    return max(32 * 1024 * 1024, min(limit, 96 * 1024 * 1024))


def _pick_exp_dtype(compute_dtype):
    """bf16 exp only when computing in bf16 on a chip with a bf16 EUP (v6e/v7x)."""
    if jnp.dtype(compute_dtype) != jnp.dtype(jnp.bfloat16):
        return jnp.float32
    try:
        kind = jax.devices()[0].device_kind.lower()
    except Exception:
        kind = ""
    if ("v6" in kind) or ("v7" in kind) or ("tpu7" in kind):
        return jnp.bfloat16
    return jnp.float32


def _pick_tile(dim, preferred, align):
    """Largest tile <= preferred that divides dim and is a multiple of align.

    Falls back to the full dim for small dims (dim <= preferred) or when no aligned
    divisor exists.  TODO(synk): masked-tail handling for pathological (prime) dims.
    """
    if dim <= preferred:
        return dim
    t = (preferred // align) * align
    while t >= align:
        if dim % t == 0:
            return t
        t -= align
    return dim


# ----------------------------------------------------------------------------
# Tiled linear projection: y = x @ W + b
# ----------------------------------------------------------------------------
def _linear_kernel(x_ref, w_ref, b_ref, o_ref, acc_ref):
    kk = pl.program_id(2)

    @pl.when(kk == 0)
    def _():
        acc_ref[...] = jnp.zeros_like(acc_ref)

    acc_ref[...] += jnp.dot(x_ref[...], w_ref[...],
                            preferred_element_type=jnp.float32)

    @pl.when(kk == pl.num_programs(2) - 1)
    def _():
        o_ref[...] = (acc_ref[...] + b_ref[...].astype(jnp.float32)).astype(o_ref.dtype)


def linear_pallas(x2d, w, b, *, tm=512, tn=1024, tk=512, out_dtype=None,
                  vmem_limit=None):
    """x2d: (M, K), w: (K, N), b: (N,) -> (M, N) in out_dtype (default x2d.dtype)."""
    M, K = x2d.shape
    Kw, N = w.shape
    assert K == Kw
    if out_dtype is None:
        out_dtype = x2d.dtype
    if vmem_limit is None:
        vmem_limit = _vmem_limit_bytes()
    tm = _pick_tile(M, tm, 8)
    tn = _pick_tile(N, tn, 128)
    tk = _pick_tile(K, tk, 128)
    return pl.pallas_call(
        _linear_kernel,
        out_shape=jax.ShapeDtypeStruct((M, N), out_dtype),
        grid=(M // tm, N // tn, K // tk),
        in_specs=[
            pl.BlockSpec((tm, tk), lambda i, j, kk: (i, kk)),
            pl.BlockSpec((tk, tn), lambda i, j, kk: (kk, j)),
            pl.BlockSpec((1, tn), lambda i, j, kk: (0, j)),
        ],
        out_specs=pl.BlockSpec((tm, tn), lambda i, j, kk: (i, j)),
        scratch_shapes=[pltpu.VMEM((tm, tn), jnp.float32)],
        compiler_params=pltpu.CompilerParams(
            dimension_semantics=("parallel", "parallel", "arbitrary"),
            vmem_limit_bytes=vmem_limit),
    )(x2d, w, b.reshape(1, N))


# ----------------------------------------------------------------------------
# Flash-style tiled multi-head attention (all heads of a q tile per grid step)
# ----------------------------------------------------------------------------
def _flash_attn_kernel(q_ref, k_ref, v_ref, o_ref, q_scr, m_ref, l_ref, acc_ref,
                       *, num_heads, head_dim, q_tile, kv_tile, causal, exp_dtype):
    qi = pl.program_id(1)
    ki = pl.program_id(2)

    @pl.when(ki == 0)
    def _init():
        m_ref[...] = jnp.full_like(m_ref, _NEG_INF)
        l_ref[...] = jnp.zeros_like(l_ref)
        acc_ref[...] = jnp.zeros_like(acc_ref)
        # Relayout the per-head Q slices once per q tile (constant across kv steps).
        # 1/sqrt(head_dim) is already folded into w_qkv, so no in-kernel rescale.
        for h in range(num_heads):
            q_scr[h] = q_ref[0, :, 0, h, :]

    def _update(masked):
        if masked:
            row = qi * q_tile + jax.lax.broadcasted_iota(
                jnp.int32, (q_tile, kv_tile), 0)
            col = ki * kv_tile + jax.lax.broadcasted_iota(
                jnp.int32, (q_tile, kv_tile), 1)
            keep = col <= row
        # TODO(synk): batched einsum over a (H, tile, D) slab (pltpu.einshape) to
        # replace the per-head strided K/V slices.
        for h in range(num_heads):
            q = q_scr[h]                      # (tq, D)
            k = k_ref[0, :, 0, h, :]          # (tk, D)
            v = v_ref[0, :, 0, h, :]          # (tk, D)
            # Contract the D axes directly -- no k.T / explicit transpose.
            s = jax.lax.dot_general(q, k, (((1,), (1,)), ((), ())),
                                    preferred_element_type=jnp.float32)  # (tq, tk)
            if masked:
                s = jnp.where(keep, s, _NEG_INF)
            m_prev = m_ref[h]                                            # (tq, 1)
            m_new = jnp.maximum(m_prev, jnp.max(s, axis=-1, keepdims=True))
            alpha = jnp.exp(m_prev - m_new)                              # f32
            # Subtraction stays f32; exp runs in exp_dtype (bf16 on v6e/v7x).
            p = jnp.exp((s - m_new).astype(exp_dtype))
            l_ref[h] = alpha * l_ref[h] + jnp.sum(p, axis=-1, keepdims=True,
                                                  dtype=jnp.float32)
            acc_ref[h] = alpha * acc_ref[h] + jnp.dot(
                p.astype(v.dtype), v, preferred_element_type=jnp.float32)
            m_ref[h] = m_new

    if causal:
        # within : tile has at least one unmasked element (otherwise skip compute;
        #          its K/V DMA is also suppressed via the clamped index_map).
        # on_diag: tile straddles the diagonal, so it actually needs the mask.
        within = ki * kv_tile <= qi * q_tile + (q_tile - 1)
        on_diag = ki * kv_tile + (kv_tile - 1) > qi * q_tile

        @pl.when(jnp.logical_and(within, on_diag))
        def _():
            _update(masked=True)

        @pl.when(jnp.logical_and(within, jnp.logical_not(on_diag)))
        def _():
            _update(masked=False)
    else:
        _update(masked=False)

    @pl.when(ki == pl.num_programs(2) - 1)
    def _finalize():
        # Exact reciprocal: runs once per q tile, negligible cost, better accuracy.
        if head_dim % 128 == 0:
            # Aligned lane slices: store each head directly, no concat temp.
            for h in range(num_heads):
                o_ref[0, :, h * head_dim:(h + 1) * head_dim] = (
                    acc_ref[h] * (1.0 / l_ref[h])).astype(o_ref.dtype)
        else:
            heads_out = [(acc_ref[h] * (1.0 / l_ref[h])).astype(o_ref.dtype)
                         for h in range(num_heads)]
            # Lane-dense (tq, num_heads*head_dim) store, ready for the out-projection.
            o_ref[0] = jnp.concatenate(heads_out, axis=-1)


def flash_attention_pallas(qkv, batch, seq, num_heads, head_dim, *,
                           causal=False, q_tile=256, kv_tile=256,
                           exp_dtype=jnp.float32, vmem_limit=None):
    """qkv: (batch*seq, 3*num_heads*head_dim) packed QKV projection output.

    Returns the attention output lane-dense as (batch, seq, num_heads*head_dim).
    """
    hidden = num_heads * head_dim
    # Contiguous reshape (no data movement); q/k/v slabs are selected through the
    # BlockSpec index_maps below, so no HBM transpose/split passes are needed.
    qkv5 = qkv.reshape(batch, seq, 3, num_heads, head_dim)
    tq = _pick_tile(seq, q_tile, 8)
    tk = _pick_tile(seq, kv_tile, 8)
    if vmem_limit is None:
        vmem_limit = _vmem_limit_bytes()

    if causal:
        # Clamp fully-masked kv tiles to the last needed block: same block index as
        # the previous step => no new K/V DMA for tiles above the diagonal.
        def kv_block(i, j):
            return jnp.minimum(j, (i * tq + (tq - 1)) // tk)
    else:
        def kv_block(i, j):
            return j

    kernel = functools.partial(
        _flash_attn_kernel, num_heads=num_heads, head_dim=head_dim,
        q_tile=tq, kv_tile=tk, causal=causal, exp_dtype=exp_dtype)

    return pl.pallas_call(
        kernel,
        out_shape=jax.ShapeDtypeStruct((batch, seq, hidden), qkv.dtype),
        grid=(batch, seq // tq, seq // tk),
        in_specs=[
            pl.BlockSpec((1, tq, 1, num_heads, head_dim),
                         lambda b, i, j: (b, i, 0, 0, 0)),              # Q slab
            pl.BlockSpec((1, tk, 1, num_heads, head_dim),
                         lambda b, i, j: (b, kv_block(i, j), 1, 0, 0)),  # K slab
            pl.BlockSpec((1, tk, 1, num_heads, head_dim),
                         lambda b, i, j: (b, kv_block(i, j), 2, 0, 0)),  # V slab
        ],
        out_specs=pl.BlockSpec((1, tq, hidden), lambda b, i, j: (b, i, 0)),
        scratch_shapes=[
            pltpu.VMEM((num_heads, tq, head_dim), qkv.dtype),    # Q, head-major
            # (H, tq, 1) keeps the lane-broadcast-friendly layout for the online
            # softmax update; the 128-lane padding costs a little VMEM (noted for
            # v7x) but avoids a per-step relayout of the statistics.
            pltpu.VMEM((num_heads, tq, 1), jnp.float32),         # running max
            pltpu.VMEM((num_heads, tq, 1), jnp.float32),         # running sum
            pltpu.VMEM((num_heads, tq, head_dim), jnp.float32),  # fp32 accumulator
        ],
        compiler_params=pltpu.CompilerParams(
            dimension_semantics=("parallel", "parallel", "arbitrary"),
            vmem_limit_bytes=vmem_limit),
    )(qkv5, qkv5, qkv5)


# ----------------------------------------------------------------------------
# SelfAttention.forward (mask=None path)
# ----------------------------------------------------------------------------
def self_attention_forward(x, params, num_heads, *, causal=False,
                           compute_dtype=jnp.bfloat16,
                           q_tile=256, kv_tile=256, lin_tiles=(512, 1024, 512)):
    # TODO(synk): masked / varlen attention (flash_attn_varlen path) not implemented.
    # TODO(synk): attention dropout (module default dropout=0) not implemented.
    B, N, C = x.shape
    hidden = params["w_qkv"].shape[1] // 3
    head_dim = hidden // num_heads
    out_dim = params["w_out"].shape[1]
    tm, tn, tk = lin_tiles
    cd = jnp.dtype(compute_dtype)
    out_dtype = x.dtype
    vmem_limit = _vmem_limit_bytes()
    exp_dtype = _pick_exp_dtype(cd)

    # Fold the 1/sqrt(head_dim) softmax scale into the Q columns of the qkv
    # projection (weights + bias), once per forward; the attention kernel does no
    # rescaling.  Weights/activations are fed in compute_dtype (bf16 fast path);
    # biases stay fp32 and are added to the fp32 accumulator inside the kernel.
    scale = float(head_dim) ** -0.5
    w_qkv = params["w_qkv"].at[:, :hidden].multiply(scale).astype(cd)
    b_qkv = params["b_qkv"].at[:hidden].multiply(scale)
    w_out = params["w_out"].astype(cd)
    b_out = params["b_out"]

    x2d = x.reshape(B * N, C).astype(cd)
    qkv = linear_pallas(x2d, w_qkv, b_qkv, tm=tm, tn=tn, tk=tk,
                        vmem_limit=vmem_limit)                     # (B*N, 3*hidden)
    attn = flash_attention_pallas(qkv, B, N, num_heads, head_dim, causal=causal,
                                  q_tile=q_tile, kv_tile=kv_tile,
                                  exp_dtype=exp_dtype, vmem_limit=vmem_limit)
    out = linear_pallas(attn.reshape(B * N, hidden), w_out, b_out,
                        tm=tm, tn=tn, tk=tk, out_dtype=out_dtype,
                        vmem_limit=vmem_limit)
    return out.reshape(B, N, out_dim)


# ----------------------------------------------------------------------------
# Pure-JAX reference (mirrors the torch code, mask=None / no flash-attn branch).
# compute_dtype emulates the kernel's bf16 HBM round-trips for fair comparison.
# ----------------------------------------------------------------------------
def _reference_forward(x, params, num_heads, causal=False,
                       compute_dtype=jnp.float32):
    cd = jnp.dtype(compute_dtype)
    f32 = jnp.float32
    B, N, _ = x.shape
    hidden = params["w_qkv"].shape[1] // 3
    head_dim = hidden // num_heads
    xq = x.astype(cd).astype(f32)
    w_qkv = params["w_qkv"].astype(cd).astype(f32)
    w_out = params["w_out"].astype(cd).astype(f32)
    qkv = (xq @ w_qkv + params["b_qkv"]).astype(cd).astype(f32)
    qkv = qkv.reshape(B, N, 3, num_heads, head_dim)
    q, k, v = qkv[:, :, 0], qkv[:, :, 1], qkv[:, :, 2]
    qh = q.transpose(0, 2, 1, 3)
    kh = k.transpose(0, 2, 1, 3)
    vh = v.transpose(0, 2, 1, 3)
    s = jnp.einsum("bhnd,bhmd->bhnm", qh, kh) / jnp.sqrt(jnp.float32(head_dim))
    if causal and N > 1:
        mask = jnp.triu(jnp.full((N, N), -jnp.inf, dtype=s.dtype), k=1)
        s = s + mask[None, None]
    p = jax.nn.softmax(s, axis=-1)
    o = jnp.einsum("bhnm,bhmd->bhnd", p, vh).transpose(0, 2, 1, 3)
    o = o.reshape(B, N, hidden).astype(cd).astype(f32)
    return o @ w_out + params["b_out"]


# ----------------------------------------------------------------------------
# Main
# ----------------------------------------------------------------------------
if __name__ == "__main__":
    def run_case(B, N, hidden_dim, num_heads, causal, compute_dtype, atol, rtol):
        input_dim = output_dim = hidden_dim
        key = jax.random.PRNGKey(0)
        k_x, k_wqkv, k_bqkv, k_wout, k_bout = jax.random.split(key, 5)
        x = jax.random.normal(k_x, (B, N, input_dim), dtype=jnp.float32)
        s_qkv = 1.0 / float(input_dim) ** 0.5
        s_out = 1.0 / float(hidden_dim) ** 0.5
        params = {
            "w_qkv": jax.random.uniform(k_wqkv, (input_dim, 3 * hidden_dim),
                                        jnp.float32, -s_qkv, s_qkv),
            "b_qkv": jax.random.uniform(k_bqkv, (3 * hidden_dim,),
                                        jnp.float32, -s_qkv, s_qkv),
            "w_out": jax.random.uniform(k_wout, (hidden_dim, output_dim),
                                        jnp.float32, -s_out, s_out),
            "b_out": jax.random.uniform(k_bout, (output_dim,),
                                        jnp.float32, -s_out, s_out),
        }
        out = self_attention_forward(x, params, num_heads, causal=causal,
                                     compute_dtype=compute_dtype)
        out = jax.block_until_ready(out)
        assert out.shape == (B, N, output_dim)
        ref = _reference_forward(x, params, num_heads, causal=causal,
                                 compute_dtype=compute_dtype)
        out32 = out.astype(jnp.float32)
        err = jnp.max(jnp.abs(out32 - ref))
        assert jnp.allclose(out32, ref, atol=atol, rtol=rtol), f"max abs err {err}"

    # Small config (single-tile path), fp32 compute: tight tolerance.
    run_case(B=2, N=8, hidden_dim=32, num_heads=4, causal=False,
             compute_dtype=jnp.float32, atol=2e-3, rtol=2e-3)
    run_case(B=2, N=8, hidden_dim=32, num_heads=4, causal=True,
             compute_dtype=jnp.float32, atol=2e-3, rtol=2e-3)
    # Small config, bf16 fast path (head_dim=16 -> scale exact in bf16).
    run_case(B=2, N=8, hidden_dim=32, num_heads=2, causal=False,
             compute_dtype=jnp.bfloat16, atol=3e-2, rtol=3e-2)
    # Multi-tile path: online softmax across kv tiles, causal clamp + diagonal /
    # interior mask split; fp32 tight, bf16 loose.
    run_case(B=2, N=512, hidden_dim=128, num_heads=2, causal=False,
             compute_dtype=jnp.float32, atol=2e-3, rtol=2e-3)
    run_case(B=2, N=512, hidden_dim=128, num_heads=2, causal=True,
             compute_dtype=jnp.float32, atol=2e-3, rtol=2e-3)
    run_case(B=2, N=512, hidden_dim=128, num_heads=2, causal=True,
             compute_dtype=jnp.bfloat16, atol=3e-2, rtol=3e-2)

    print("KERNEL_OK")
</pallas_src>

<mosaic_0001>
module attributes {stable_mosaic.version = 11 : i64} {
  func.func @_linear_kernel(%arg0: i32, %arg1: i32, %arg2: i32, %arg3: memref<16x32xf32, #tpu.memory_space<vmem>>, %arg4: memref<32x96xf32, #tpu.memory_space<vmem>>, %arg5: memref<1x96xf32, #tpu.memory_space<vmem>>, %arg6: memref<16x96xf32, #tpu.memory_space<vmem>>, %arg7: memref<16x96xf32, #tpu.memory_space<vmem>>) attributes {dimension_semantics = [#tpu.dimension_semantics<parallel>, #tpu.dimension_semantics<parallel>, #tpu.dimension_semantics<arbitrary>], iteration_bounds = array<i64: 1, 1, 1>, scalar_prefetch = 0 : i64, scratch_operands = 1 : i64, tpu.core_type = #tpu.core_type<tc>, window_params = [{transform_indices = @transform_0, window_bounds = array<i64: 16, 32>}, {transform_indices = @transform_1, window_bounds = array<i64: 32, 96>}, {transform_indices = @transform_2, window_bounds = array<i64: 1, 96>}, {transform_indices = @transform_3, window_bounds = array<i64: 16, 96>}]} {
    %c0_i32 = arith.constant 0 : i32
    %0 = arith.cmpi eq, %arg2, %c0_i32 : i32
    %1 = arith.extui %0 : i1 to i32
    %c0_i32_0 = arith.constant 0 : i32
    %2 = arith.cmpi ne, %1, %c0_i32_0 : i32
    scf.if %2 {
      %cst_10 = arith.constant 0.000000e+00 : f32
      %12 = vector.broadcast %cst_10 : f32 to vector<16x96xf32>
      %c0_11 = arith.constant 0 : index
      %c0_12 = arith.constant 0 : index
      %13 = vector.load %arg7[%c0_11, %c0_12] : memref<16x96xf32, #tpu.memory_space<vmem>>, vector<16x96xf32>
      tpu.vector_store %arg7[%c0_11, %c0_12], %12 {strides = array<i32>} : memref<16x96xf32, #tpu.memory_space<vmem>>, vector<16x96xf32>,
    } else {
    }
    %c0 = arith.constant 0 : index
    %c0_1 = arith.constant 0 : index
    %3 = vector.load %arg7[%c0, %c0_1] : memref<16x96xf32, #tpu.memory_space<vmem>>, vector<16x96xf32>
    %c0_2 = arith.constant 0 : index
    %c0_3 = arith.constant 0 : index
    %4 = vector.load %arg3[%c0_2, %c0_3] : memref<16x32xf32, #tpu.memory_space<vmem>>, vector<16x32xf32>
    %c0_4 = arith.constant 0 : index
    %c0_5 = arith.constant 0 : index
    %5 = vector.load %arg4[%c0_4, %c0_5] : memref<32x96xf32, #tpu.memory_space<vmem>>, vector<32x96xf32>
    %cst = arith.constant dense<0.000000e+00> : vector<16x96xf32>
    %6 = tpu.matmul %4, %5, %cst {dimension_numbers = #tpu.dot_dimension_numbers<[1], [0], [0], [1], [0, 0, 1, 1], [], []>} : vector<16x32xf32>, vector<32x96xf32>, vector<16x96xf32> -> vector<16x96xf32>
    %7 = arith.addf %3, %6 : vector<16x96xf32>
    %c0_6 = arith.constant 0 : index
    %c0_7 = arith.constant 0 : index
    %8 = vector.load %arg7[%c0_6, %c0_7] : memref<16x96xf32, #tpu.memory_space<vmem>>, vector<16x96xf32>
    tpu.vector_store %arg7[%c0_6, %c0_7], %7 {strides = array<i32>} : memref<16x96xf32, #tpu.memory_space<vmem>>, vector<16x96xf32>,
    %c0_i32_8 = arith.constant 0 : i32
    %9 = arith.cmpi eq, %arg2, %c0_i32_8 : i32
    %10 = arith.extui %9 : i1 to i32
    %c0_i32_9 = arith.constant 0 : i32
    %11 = arith.cmpi ne, %10, %c0_i32_9 : i32
    scf.if %11 {
      %c0_10 = arith.constant 0 : index
      %c0_11 = arith.constant 0 : index
      %12 = vector.load %arg7[%c0_10, %c0_11] : memref<16x96xf32, #tpu.memory_space<vmem>>, vector<16x96xf32>
      %c0_12 = arith.constant 0 : index
      %c0_13 = arith.constant 0 : index
      %13 = vector.load %arg5[%c0_12, %c0_13] : memref<1x96xf32, #tpu.memory_space<vmem>>, vector<1x96xf32>
      %14 = vector.broadcast %13 : vector<1x96xf32> to vector<16x96xf32>
      %15 = arith.addf %12, %14 : vector<16x96xf32>
      %c0_14 = arith.constant 0 : index
      %c0_15 = arith.constant 0 : index
      %16 = vector.load %arg6[%c0_14, %c0_15] : memref<16x96xf32, #tpu.memory_space<vmem>>, vector<16x96xf32>
      tpu.vector_store %arg6[%c0_14, %c0_15], %15 {strides = array<i32>} : memref<16x96xf32, #tpu.memory_space<vmem>>, vector<16x96xf32>,
    } else {
    }
    return
  }
  func.func @transform_0(%arg0: i32, %arg1: i32, %arg2: i32) -> (i32, i32) {
    %c0_i32 = arith.constant 0 : i32
    return %arg0, %arg2 : i32, i32
  }
  func.func @transform_1(%arg0: i32, %arg1: i32, %arg2: i32) -> (i32, i32) {
    %c0_i32 = arith.constant 0 : i32
    return %arg2, %arg1 : i32, i32
  }
  func.func @transform_2(%arg0: i32, %arg1: i32, %arg2: i32) -> (i32, i32) {
    %c0_i32 = arith.constant 0 : i32
    %c0_i32_0 = arith.constant 0 : i32
    return %c0_i32, %arg1 : i32, i32
  }
  func.func @transform_3(%arg0: i32, %arg1: i32, %arg2: i32) -> (i32, i32) {
    %c0_i32 = arith.constant 0 : i32
    return %arg0, %arg1 : i32, i32
  }
}

</mosaic_0001>

<llo_original>
// kernel: tpu_custom_call.1
$region0: #{tpu_custom_call.1}
  #allocation0 [shape = 'u32[]', space=smem, size = 0x4, offset = 0x4, fixed_abs, tag = 'smem constant byte address 0x4 - core index']
  #allocation1 [shape = 'u32[144,128]{1,0:T(1,128)}', space=vmem, size = 0x12000, scoped, tag = 'internal scratch']
  #allocation2 [shape = 'f32[16,96]{1,0:T(8,128)}', space=vmem, size = 0x2000, scoped, tag = 'scratch operand']
  %s0 = inlined_call_operand.hbm [shape: f32[16,32], index: 0, kind: input, shape index: {}]
  %s1 = inlined_call_operand.hbm [shape: f32[32,96], index: 1, kind: input, shape index: {}]
  %s2 = inlined_call_operand.vmem [shape: f32[1,96], index: 2, kind: input, shape index: {}]
  %s3 = inlined_call_operand.hbm [shape: f32[16,96], index: 3, kind: output, shape index: {}]
  %s4 = sld [smem:[#allocation0]]
  $region38: #{tpu_custom_call.1} parent=0
    _
  %s6 = ssub.s32 1, %s4
  %s7 = scalar_select 0, %s6, %s4
  $region1: #{tpu_custom_call.1} parent=0
    #allocation3 [shape = 'u8[8192]{0}', space=vmem, size = 0x2000, scoped, tag = 'input window, operand 0, single buffered']
    #allocation4 [shape = 's32[1]{0}', space=sflag, size = 0x4, scoped, tag = 'scoped memory for tpu_custom_call.1']
    #allocation5 [shape = 's32[1]{0}', space=sflag, size = 0x4, scoped, tag = 'scoped memory for tpu_custom_call.1']
    #allocation6 [shape = 'u8[16384]{0}', space=vmem, size = 0x4000, scoped, tag = 'input window, operand 1, single buffered']
    #allocation7 [shape = 's32[1]{0}', space=sflag, size = 0x4, scoped, tag = 'scoped memory for tpu_custom_call.1']
    #allocation8 [shape = 'u8[8192]{0}', space=vmem, size = 0x2000, scoped, tag = 'output window, operand 0, single buffered']
    %8 = vsyncpa [#allocation4], 0
    %9 = vsyncpa [#allocation7], 0
    %10 = vsyncpa [#allocation5], 0
    // Predicated region
    $region2: #{tpu_custom_call.1} parent=1 // pred_check
      _
    $region3: #{tpu_custom_call.1} parent=1 // pred_check_branch
      %12 = sbr.rel (0) target = $region5
    $region4: #{tpu_custom_call.1} parent=1 // pred_region
      %s14 = ssub.s32 256, 256
      %15 = vsyncadd [#allocation4], %s14
      %s16 = sshll.u32 [#allocation3], 4
      %s17 = int_to_ptr.vmem [resolvable:$true] %s16
      %22 = dma.hbm_to_vmem [thread:$0]  %s0, 256, %s17, [#allocation4], 128, 128, 8
    $region5: #{tpu_custom_call.1} parent=1 // pred_fallthru
      _
    // Predicated region
    $region6: #{tpu_custom_call.1} parent=1 // pred_check
      _
    $region7: #{tpu_custom_call.1} parent=1 // pred_check_branch
      %24 = sbr.rel (0) target = $region9
    $region8: #{tpu_custom_call.1} parent=1 // pred_region
      %s26 = ssub.s32 512, 512
      %27 = vsyncadd [#allocation7], %s26
      %s28 = sshll.u32 [#allocation6], 4
      %s29 = int_to_ptr.vmem [resolvable:$true] %s28
      %34 = dma.hbm_to_vmem [thread:$0]  %s1, 512, %s29, [#allocation7], 128, 128, 8
    $region9: #{tpu_custom_call.1} parent=1 // pred_fallthru
      _
    // Predicated region
    $region10: #{tpu_custom_call.1} parent=1 // pred_check
      _
    $region11: #{tpu_custom_call.1} parent=1 // pred_check_branch
      %36 = sbr.rel (0) target = $region13
    $region12: #{tpu_custom_call.1} parent=1 // pred_region
      _
    $region13: #{tpu_custom_call.1} parent=1 // pred_fallthru
      _
    // Predicated region
    $region14: #{tpu_custom_call.1} parent=1 // pred_check
      _
    $region15: #{tpu_custom_call.1} parent=1 // pred_check_branch
      %38 = sbr.rel (0) target = $region17
    $region16: #{tpu_custom_call.1} parent=1 // pred_region
      %39 = dma.done [#allocation4], 256
    $region17: #{tpu_custom_call.1} parent=1 // pred_fallthru
      _
    // Predicated region
    $region18: #{tpu_custom_call.1} parent=1 // pred_check
      _
    $region19: #{tpu_custom_call.1} parent=1 // pred_check_branch
      %41 = sbr.rel (0) target = $region21
    $region20: #{tpu_custom_call.1} parent=1 // pred_region
      %42 = dma.done [#allocation7], 512
    $region21: #{tpu_custom_call.1} parent=1 // pred_fallthru
      _
    %p43 = scmp.eq.s32.totalorder 0, 0
    // Predicated region
    $region22: #{tpu_custom_call.1} parent=1 // pred_check
      %p44 = pneg %p43
    $region23: #{tpu_custom_call.1} parent=1 // pred_check_branch
      %46 = sbr.rel (%p44) target = $region25
    $region24: #{tpu_custom_call.1} parent=1 // pred_region
      %vm47 = vcmask 785408
      %48 = vst.msk [vmem:[#allocation2] sm:$0xff] %vm47, 0.0
      %49 = vst.msk [vmem:[#allocation2 + $0x8] sm:$0xff] %vm47, 0.0
    $region25: #{tpu_custom_call.1} parent=1 // pred_fallthru
      _
    %v50 = vld [vmem:[#allocation2] sm:$0xff]
    %v51 = vld [vmem:[#allocation2 + $0x8] sm:$0xff]
    %v52 = vld [vmem:[#allocation3] sm:$0xff]
    %v53 = vld [vmem:[#allocation3 + $0x8] sm:$0xff]
    %v54 = vld [vmem:[#allocation6] sm:$0xff]
    %v55 = vld [vmem:[#allocation6 + $0x8] sm:$0xff]
    %v56 = vld [vmem:[#allocation6 + $0x10] sm:$0xff]
    %v57 = vld [vmem:[#allocation6 + $0x18] sm:$0xff]
    %vm58 = vcmask 261120
    %v60 = vsel %vm58, %v52, 0
    %v63 = vsel %vm58, %v53, 0
    %65 = vmatprep.subr.mxu0 0.0
    %66 = vmatpush1.msra.mxu0 %v54
    %67 = vmatprep.subr.mxu0 0.0
    %68 = vmatpush1.msra.mxu0 %v55
    %69 = vmatprep.subr.mxu0 0.0
    %70 = vmatpush1.msra.mxu0 %v56
    %71 = vmatprep.subr.mxu0 0.0
    %72 = vmatpush1.msra.mxu0 %v57
    %73 = vmatprep.subr.mxu0 0.0
    %74 = vmatpush1.msra.mxu0 0.0
    %75 = vmatprep.subr.mxu0 0.0
    %76 = vmatpush1.msra.mxu0 0.0
    %77 = vmatprep.subr.mxu0 0.0
    %78 = vmatpush1.msra.mxu0 0.0
    %79 = vmatprep.subr.mxu0 0.0
    %80 = vmatpush1.msra.mxu0 0.0
    %81 = vmatprep.subr.mxu0 0.0
    %82 = vmatpush1.msra.mxu0 0.0
    %83 = vmatprep.subr.mxu0 0.0
    %84 = vmatpush1.msra.mxu0 0.0
    %85 = vmatprep.subr.mxu0 0.0
    %86 = vmatpush1.msra.mxu0 0.0
    %87 = vmatprep.subr.mxu0 0.0
    %88 = vmatpush1.msra.mxu0 0.0
    %89 = vmatprep.subr.mxu0 0.0
    %90 = vmatpush1.msra.mxu0 0.0
    %91 = vmatprep.subr.mxu0 0.0
    %92 = vmatpush1.msra.mxu0 0.0
    %93 = vmatprep.subr.mxu0 0.0
    %94 = vmatpush1.msra.mxu0 0.0
    %95 = vmatprep.subr.mxu0 0.0
    %96 = vmatpush1.msra.mxu0 0.0
    %97 = vmatprep.subr.mxu0 0.0
    %98 = vmatpush1.msra.mxu0 0.0
    %99 = vmatprep.subr.mxu0 0.0
    %100 = vmatpush1.msra.mxu0 0.0
    %101 = vmatprep.subr.mxu0 0.0
    %102 = vmatpush1.msra.mxu0 0.0
    %103 = vmatprep.subr.mxu0 0.0
    %104 = vmatpush1.msra.mxu0 0.0
    %105 = vmatprep.subr.mxu0 0.0
    %106 = vmatpush1.msra.mxu0 0.0
    %107 = vmatprep.subr.mxu0 0.0
    %108 = vmatpush1.msra.mxu0 0.0
    %109 = vmatprep.subr.mxu0 0.0
    %110 = vmatpush1.msra.mxu0 0.0
    %111 = vmatprep.subr.mxu0 0.0
    %112 = vmatpush1.msra.mxu0 0.0
    %113 = vmatprep.subr.mxu0 0.0
    %114 = vmatpush1.msra.mxu0 0.0
    %115 = vmatprep.subr.mxu0 0.0
    %116 = vmatpush1.msra.mxu0 0.0
    %117 = vmatprep.subr.mxu0 0.0
    %118 = vmatpush1.msra.mxu0 0.0
    %119 = vmatprep.subr.mxu0 0.0
    %120 = vmatpush1.msra.mxu0 0.0
    %121 = vmatprep.subr.mxu0 0.0
    %122 = vmatpush1.msra.mxu0 0.0
    %123 = vmatprep.subr.mxu0 0.0
    %124 = vmatpush1.msra.mxu0 0.0
    %125 = vmatprep.subr.mxu0 0.0
    %126 = vmatpush1.msra.mxu0 0.0
    %127 = vmatprep.subr.mxu0 0.0
    %128 = vmatpush1.msra.mxu0 0.0
    %129 = vmatprep.mubr.f32.mxu0 0.0
    %130 = vmatmul.mubr.f32.gmra.mrb[0].mxu0 %v60
    %v131 = vpop.f32.mrb[0].mxu0
    %v132 = vadd.f32 0.0, %v131
    %v133 = vpop.f32.mrb[0].mxu0
    %134 = vmatprep.mubr.f32.mxu0 0.0
    %135 = vmatmul.mubr.f32.gmra.mrb[0].mxu0 %v63
    %v136 = vpop.f32.mrb[0].mxu0
    %v137 = vadd.f32 0.0, %v136
    %v138 = vpop.f32.mrb[0].mxu0
    %139 = vdwg.mxu0
    %v140 = vadd.f32 %v50, %v132
    %v141 = vadd.f32 %v51, %v137
    %vm142 = vcmask 785408
    %143 = vst.msk [vmem:[#allocation2] sm:$0xff] %vm142, %v140
    %144 = vst.msk [vmem:[#allocation2 + $0x8] sm:$0xff] %vm142, %v141
    // Predicated region
    $region26: #{tpu_custom_call.1} parent=1 // pred_check
      %p145 = pneg %p43
    $region27: #{tpu_custom_call.1} parent=1 // pred_check_branch
      %147 = sbr.rel (%p145) target = $region29
    $region28: #{tpu_custom_call.1} parent=1 // pred_region
      %v148 = vld [vmem:[#allocation2] sm:$0xff]
      %v149 = vld [vmem:[#allocation2 + $0x8] sm:$0xff]
      %v150 = vld [vmem:[%s2] sm:$0x1]
      %v152 = vlaneseq
      %v153 = vshrl.u32 %v152, 7
      %v154 = vsub.s32 0, %v153
      %v155 = vrot.slane %v150, %v154
      %v157 = vadd.f32 %v148, %v155
      %v158 = vadd.f32 %v149, %v155
      %159 = vst.msk [vmem:[#allocation8] sm:$0xff] %vm142, %v157
      %160 = vst.msk [vmem:[#allocation8 + $0x8] sm:$0xff] %vm142, %v158
    $region29: #{tpu_custom_call.1} parent=1 // pred_fallthru
      _
    // Predicated region
    $region30: #{tpu_custom_call.1} parent=1 // pred_check
      _
    $region31: #{tpu_custom_call.1} parent=1 // pred_check_branch
      %162 = sbr.rel (0) target = $region33
    $region32: #{tpu_custom_call.1} parent=1 // pred_region
      %s164 = ssub.s32 256, 256
      %165 = vsyncadd [#allocation5], %s164
      %s166 = sshll.u32 [#allocation8], 4
      %s167 = int_to_ptr.vmem [resolvable:$true] %s166
      %172 = dma.vmem_to_hbm [thread:$0]  %s167, 256, %s3, [#allocation5], 128, 128, 8
    $region33: #{tpu_custom_call.1} parent=1 // pred_fallthru
      _
    // Predicated region
    $region34: #{tpu_custom_call.1} parent=1 // pred_check
      _
    $region35: #{tpu_custom_call.1} parent=1 // pred_check_branch
      %174 = sbr.rel (0) target = $region37
    $region36: #{tpu_custom_call.1} parent=1 // pred_region
      %175 = dma.done [#allocation5], 256
    $region37: #{tpu_custom_call.1} parent=1 // pred_fallthru
      _
    %176 = vsyncpa [#allocation4], 1
    %177 = vsyncpa [#allocation7], 1
    %178 = vsyncpa [#allocation5], 1

</llo_original>
